<compile_context>
chip_gen: v6e
topology: v6e:2x2x1
jax: 0.10.0
libtpu: 0.0.40
codegen_flags: <defaults>
</compile_context>

<pallas_src>
import math

import jax
import jax.numpy as jnp
from jax.experimental import pallas as pl
from jax.experimental.pallas import tpu as pltpu

K = 26                # damping memory-kernel length (out_channels)
LANES = 128           # vreg lane count
SUB = 8               # vreg sublane count
MAX_TILE_ROWS = 1024  # rows of 128 lanes per grid step (1024*128*4B = 512 KiB/operand)


def _cdiv(a, b):
    return -(-a // b)


def _round_up(a, m):
    return _cdiv(a, m) * m


def _force_kernel(scal_ref, w0_ref, w1_ref, r_ref, e_ref, va_ref, vb_ref,
                  pf_ref, df_ref):
    """One (tile_rows, 128) batch tile.

    scal_ref: SMEM f32[5]        -> [E_linear, freq, phase, well_coef, rescale]
    w0_ref  : VMEM f32[128,128]   Toeplitz weights, W0[m, l] = kflip[m - l]
    w1_ref  : VMEM f32[128,128]   Toeplitz weights, W1[m, l] = kflip[128 + m - l]
    r_ref   : VMEM f32[T, 128]
    e_ref   : VMEM f32[T, 128]
    va_ref  : VMEM f32[T, 128]    v rows [i*T, i*T + T)
    vb_ref  : VMEM f32[8, 128]    v rows [i*T + T, i*T + T + 8)   (halo)
    pf_ref  : VMEM f32[T, 128]    potential + external force
    df_ref  : VMEM f32[T, 128]    damping force
    """
    e_lin = scal_ref[0]
    freq = scal_ref[1]
    phase = scal_ref[2]
    well_coef = scal_ref[3]
    rescale = scal_ref[4]

    # ---- potential + external force (elementwise VPU/EUP path) -------------
    r = r_ref[...]
    arg = freq * r + phase
    tanhz = jnp.tanh(rescale * (1.0 - jnp.cos(arg)))
    pot = (-well_coef) * (1.0 - tanhz * tanhz) * (rescale * freq) * jnp.sin(arg)
    # external force keeps the reference's 0*r term for exact semantics
    pf_ref[...] = pot + 0.0 * r + e_lin * e_ref[...]

    # ---- damping force: conv1d as Toeplitz matmuls on the MXU ---------------
    # df[s, l] = sum_j kflip[j] * v_flat[(i*T + s)*128 + l + j]
    #          = va[s, :] @ W0[:, l] + v_row(s + 1)[:] @ W1[:, l]
    va = va_ref[...]                                    # rows [i*T, i*T+T)
    tr = va.shape[0]
    vcat = jnp.concatenate([va, vb_ref[...]], axis=0)   # rows [i*T, i*T+T+8)
    vhi = vcat[1:tr + 1, :]                             # rows [i*T+1, i*T+T+1)

    df = jnp.dot(va, w0_ref[...], preferred_element_type=jnp.float32)
    df = df + jnp.dot(vhi, w1_ref[...], preferred_element_type=jnp.float32)
    df_ref[...] = df


def init_params():
    """Deterministic parameters following force_model.__init__ shapes."""
    return dict(
        E_linear=jnp.float32(1.0),
        well_freq=jnp.float32(1.0),          # registered buffer
        well_freq_shift=jnp.float32(1.01),
        well_coef=jnp.float32(1.0),
        rescale=jnp.float32(1.0),
        well_bias=jnp.float32(-0.2),
        # __init__ sets _kernel = -0*exp(-arange(K)/4) == zeros; use a
        # non-trivial deterministic memory kernel so the damping path is tested.
        kernel=-jnp.exp(-jnp.arange(K, dtype=jnp.float32) / 4.0),
    )


def force_model_forward(params, r, v, e, *, max_tile_rows=MAX_TILE_ROWS):
    """Equivalent of force_model.forward(r, v, e) (tensor `v` branch)."""
    nb = int(r.shape[0])
    assert v.shape[0] == nb + K - 1
    assert max_tile_rows % SUB == 0

    f32 = jnp.float32
    e_arr = jnp.asarray(e, f32)
    assert e_arr.ndim == 0 or e_arr.shape == (nb,), "e must be scalar or (nbatch,)"

    # ---- tiling --------------------------------------------------------------
    rows_needed = max(1, _cdiv(nb, LANES))
    tile_rows = min(max_tile_rows, _round_up(rows_needed, SUB))
    n_tiles = _cdiv(rows_needed, tile_rows)
    rows = n_tiles * tile_rows           # padded row count (multiple of tile)
    nbp = rows * LANES                   # lane-dense padded batch
    rows_v = rows + SUB                  # one extra 8-row block for the halo

    # ---- derived scalars (SMEM) ----------------------------------------------
    freq = params["well_freq"] * params["well_freq_shift"] * (2.0 * math.pi)
    phase = freq * params["well_bias"]
    scal = jnp.stack([params["E_linear"], freq, phase,
                      params["well_coef"], params["rescale"]]).astype(f32)

    # ---- Toeplitz weights for the damping conv (built once, 2 x 64 KiB) -------
    # torch conv1d(v, flip(kernel)):  df[i] = sum_j kflip[j] * v[i + j],
    # with kflip = kernel[::-1].
    kflip = params["kernel"][::-1].astype(f32)
    idx = jnp.arange(LANES)
    diff = idx[:, None] - idx[None, :]          # (m, lane) -> m - lane

    def band(d):
        return jnp.where((d >= 0) & (d < K),
                         kflip[jnp.clip(d, 0, K - 1)], 0.0).astype(f32)

    w0 = band(diff)
    w1 = band(diff + LANES)

    # ---- lane/sublane-dense padded layouts -------------------------------------
    r2 = jnp.pad(jnp.asarray(r, f32), (0, nbp - nb)).reshape(rows, LANES)
    e2 = jnp.pad(jnp.broadcast_to(e_arr, (nb,)),
                 (0, nbp - nb)).reshape(rows, LANES)
    v2 = jnp.pad(jnp.asarray(v, f32),
                 (0, rows_v * LANES - (nb + K - 1))).reshape(rows_v, LANES)

    tile_spec = pl.BlockSpec((tile_rows, LANES), lambda i: (i, 0))
    vb_stride = tile_rows // SUB

    cost = pl.CostEstimate(
        flops=nbp * (4 * LANES + 16),
        transcendentals=3 * nbp,
        bytes_accessed=4 * (5 * nbp + rows_v * LANES
                            + n_tiles * SUB * LANES + 2 * LANES * LANES),
    )

    pf, df = pl.pallas_call(
        _force_kernel,
        out_shape=(
            jax.ShapeDtypeStruct((rows, LANES), f32),
            jax.ShapeDtypeStruct((rows, LANES), f32),
        ),
        grid=(n_tiles,),
        in_specs=[
            pl.BlockSpec(memory_space=pltpu.MemorySpace.SMEM),        # scalars
            pl.BlockSpec((LANES, LANES), lambda i: (0, 0)),           # W0
            pl.BlockSpec((LANES, LANES), lambda i: (0, 0)),           # W1
            tile_spec,                                                # r
            tile_spec,                                                # e
            tile_spec,                                                # v rows
            pl.BlockSpec((SUB, LANES),                                # v halo
                         lambda i: ((i + 1) * vb_stride, 0)),
        ],
        out_specs=(tile_spec, tile_spec),
        compiler_params=pltpu.CompilerParams(
            dimension_semantics=("parallel",),
            vmem_limit_bytes=32 * 1024 * 1024,
        ),
        cost_estimate=cost,
    )(scal, w0, w1, r2, e2, v2, v2)

    return pf.reshape(nbp)[:nb], df.reshape(nbp)[:nb]


def reference_forward(params, r, v, e):
    """Pure-JAX mirror of the PyTorch forward, for verification."""
    freq = params["well_freq"] * params["well_freq_shift"] * 2.0 * math.pi
    phase = freq * params["well_bias"]
    arg = freq * r + phase
    tanhz = jnp.tanh(params["rescale"] * (1.0 - jnp.cos(arg)))
    pf = (-params["well_coef"] * (1.0 - tanhz ** 2) * params["rescale"]
          * freq * jnp.sin(arg))
    pf = pf + 0.0 * r + params["E_linear"] * e
    kflip = params["kernel"][::-1]
    nb = r.shape[0]
    win = jnp.arange(nb)[:, None] + jnp.arange(K)[None, :]
    df = jnp.sum(v[win] * kflip[None, :], axis=-1)
    return pf, df


if __name__ == "__main__":
    params = init_params()

    # jit the wrapper so the pad/reshape/slice layout plumbing fuses with the
    # pallas_call into a single dispatch.
    fwd = jax.jit(force_model_forward, static_argnames=("max_tile_rows",))

    # (nbatch, max_tile_rows): the last config forces a 2-tile grid so the
    # cross-tile halo of the damping conv is exercised.
    for nbatch, mtr in ((8, MAX_TILE_ROWS), (1500, MAX_TILE_ROWS), (1500, 8)):
        key = jax.random.PRNGKey(0)
        k_r, k_v, k_e = jax.random.split(key, 3)
        r = jax.random.normal(k_r, (nbatch,), dtype=jnp.float32)
        v = jax.random.normal(k_v, (nbatch + K - 1,), dtype=jnp.float32)
        e = jax.random.normal(k_e, (nbatch,), dtype=jnp.float32)

        pf, df = fwd(params, r, v, e, max_tile_rows=mtr)
        jax.block_until_ready((pf, df))

        pf_ref, df_ref = reference_forward(params, r, v, e)
        assert pf.shape == (nbatch,) and df.shape == (nbatch,)
        assert jnp.allclose(pf, pf_ref, rtol=1e-5, atol=2e-5), ("pf", nbatch, mtr)
        assert jnp.allclose(df, df_ref, rtol=1e-5, atol=1e-4), ("df", nbatch, mtr)

    print("KERNEL_OK")
</pallas_src>

<mosaic_0001>
module attributes {stable_mosaic.version = 11 : i64} {
  func.func @_force_kernel(%arg0: i32, %arg1: memref<5xf32, #tpu.memory_space<smem>>, %arg2: memref<128x128xf32, #tpu.memory_space<vmem>>, %arg3: memref<128x128xf32, #tpu.memory_space<vmem>>, %arg4: memref<8x128xf32, #tpu.memory_space<vmem>>, %arg5: memref<8x128xf32, #tpu.memory_space<vmem>>, %arg6: memref<8x128xf32, #tpu.memory_space<vmem>>, %arg7: memref<8x128xf32, #tpu.memory_space<vmem>>, %arg8: memref<8x128xf32, #tpu.memory_space<vmem>>, %arg9: memref<8x128xf32, #tpu.memory_space<vmem>>) attributes {dimension_semantics = [#tpu.dimension_semantics<parallel>], iteration_bounds = array<i64: 1>, scalar_prefetch = 0 : i64, scratch_operands = 0 : i64, tpu.core_type = #tpu.core_type<tc>, window_params = [{transform_indices = @transform_0, window_bounds = array<i64: 5>}, {pipeline_mode = #tpu.pipeline_mode<synchronous>, transform_indices = @transform_1, window_bounds = array<i64: 128, 128>}, {pipeline_mode = #tpu.pipeline_mode<synchronous>, transform_indices = @transform_2, window_bounds = array<i64: 128, 128>}, {transform_indices = @transform_3, window_bounds = array<i64: 8, 128>}, {transform_indices = @transform_4, window_bounds = array<i64: 8, 128>}, {transform_indices = @transform_5, window_bounds = array<i64: 8, 128>}, {transform_indices = @transform_6, window_bounds = array<i64: 8, 128>}, {transform_indices = @transform_7, window_bounds = array<i64: 8, 128>}, {transform_indices = @transform_8, window_bounds = array<i64: 8, 128>}]} {
    %c0 = arith.constant 0 : index
    %0 = memref.load %arg1[%c0] : memref<5xf32, #tpu.memory_space<smem>>
    %c1 = arith.constant 1 : index
    %1 = memref.load %arg1[%c1] : memref<5xf32, #tpu.memory_space<smem>>
    %c2 = arith.constant 2 : index
    %2 = memref.load %arg1[%c2] : memref<5xf32, #tpu.memory_space<smem>>
    %c3 = arith.constant 3 : index
    %3 = memref.load %arg1[%c3] : memref<5xf32, #tpu.memory_space<smem>>
    %c4 = arith.constant 4 : index
    %4 = memref.load %arg1[%c4] : memref<5xf32, #tpu.memory_space<smem>>
    %c0_0 = arith.constant 0 : index
    %c0_1 = arith.constant 0 : index
    %5 = vector.load %arg4[%c0_0, %c0_1] : memref<8x128xf32, #tpu.memory_space<vmem>>, vector<8x128xf32>
    %6 = vector.broadcast %1 : f32 to vector<8x128xf32>
    %7 = arith.mulf %6, %5 : vector<8x128xf32>
    %8 = vector.broadcast %2 : f32 to vector<8x128xf32>
    %9 = arith.addf %7, %8 : vector<8x128xf32>
    %10 = math.cos %9 : vector<8x128xf32>
    %cst = arith.constant 1.000000e+00 : f32
    %11 = vector.broadcast %cst : f32 to vector<8x128xf32>
    %12 = arith.subf %11, %10 : vector<8x128xf32>
    %13 = vector.broadcast %4 : f32 to vector<8x128xf32>
    %14 = arith.mulf %13, %12 : vector<8x128xf32>
    %15 = math.tanh %14 : vector<8x128xf32>
    %cst_2 = arith.constant 0.000000e+00 : f32
    %16 = arith.subf %cst_2, %3 : f32
    %17 = arith.mulf %15, %15 : vector<8x128xf32>
    %cst_3 = arith.constant 1.000000e+00 : f32
    %18 = vector.broadcast %cst_3 : f32 to vector<8x128xf32>
    %19 = arith.subf %18, %17 : vector<8x128xf32>
    %20 = vector.broadcast %16 : f32 to vector<8x128xf32>
    %21 = arith.mulf %20, %19 : vector<8x128xf32>
    %22 = arith.mulf %4, %1 : f32
    %23 = vector.broadcast %22 : f32 to vector<8x128xf32>
    %24 = arith.mulf %21, %23 : vector<8x128xf32>
    %25 = math.sin %9 : vector<8x128xf32>
    %26 = arith.mulf %24, %25 : vector<8x128xf32>
    %cst_4 = arith.constant 0.000000e+00 : f32
    %27 = vector.broadcast %cst_4 : f32 to vector<8x128xf32>
    %28 = arith.mulf %27, %5 : vector<8x128xf32>
    %29 = arith.addf %26, %28 : vector<8x128xf32>
    %c0_5 = arith.constant 0 : index
    %c0_6 = arith.constant 0 : index
    %30 = vector.load %arg5[%c0_5, %c0_6] : memref<8x128xf32, #tpu.memory_space<vmem>>, vector<8x128xf32>
    %31 = vector.broadcast %0 : f32 to vector<8x128xf32>
    %32 = arith.mulf %31, %30 : vector<8x128xf32>
    %33 = arith.addf %29, %32 : vector<8x128xf32>
    %c0_7 = arith.constant 0 : index
    %c0_8 = arith.constant 0 : index
    %34 = vector.load %arg8[%c0_7, %c0_8] : memref<8x128xf32, #tpu.memory_space<vmem>>, vector<8x128xf32>
    tpu.vector_store %arg8[%c0_7, %c0_8], %33 {strides = array<i32>} : memref<8x128xf32, #tpu.memory_space<vmem>>, vector<8x128xf32>,
    %c0_9 = arith.constant 0 : index
    %c0_10 = arith.constant 0 : index
    %35 = vector.load %arg6[%c0_9, %c0_10] : memref<8x128xf32, #tpu.memory_space<vmem>>, vector<8x128xf32>
    %c0_11 = arith.constant 0 : index
    %c0_12 = arith.constant 0 : index
    %36 = vector.load %arg7[%c0_11, %c0_12] : memref<8x128xf32, #tpu.memory_space<vmem>>, vector<8x128xf32>
    %37 = tpu.concatenate %35, %36 in 0 : vector<8x128xf32>, vector<8x128xf32> -> vector<16x128xf32>
    %38 = vector.extract_strided_slice %37 {offsets = [1, 0], sizes = [8, 128], strides = [1, 1]} : vector<16x128xf32> to vector<8x128xf32>
    %c0_13 = arith.constant 0 : index
    %c0_14 = arith.constant 0 : index
    %39 = vector.load %arg2[%c0_13, %c0_14] : memref<128x128xf32, #tpu.memory_space<vmem>>, vector<128x128xf32>
    %cst_15 = arith.constant dense<0.000000e+00> : vector<8x128xf32>
    %40 = tpu.matmul %35, %39, %cst_15 {dimension_numbers = #tpu.dot_dimension_numbers<[1], [0], [0], [1], [0, 0, 1, 1], [], []>} : vector<8x128xf32>, vector<128x128xf32>, vector<8x128xf32> -> vector<8x128xf32>
    %c0_16 = arith.constant 0 : index
    %c0_17 = arith.constant 0 : index
    %41 = vector.load %arg3[%c0_16, %c0_17] : memref<128x128xf32, #tpu.memory_space<vmem>>, vector<128x128xf32>
    %cst_18 = arith.constant dense<0.000000e+00> : vector<8x128xf32>
    %42 = tpu.matmul %38, %41, %cst_18 {dimension_numbers = #tpu.dot_dimension_numbers<[1], [0], [0], [1], [0, 0, 1, 1], [], []>} : vector<8x128xf32>, vector<128x128xf32>, vector<8x128xf32> -> vector<8x128xf32>
    %43 = arith.addf %40, %42 : vector<8x128xf32>
    %c0_19 = arith.constant 0 : index
    %c0_20 = arith.constant 0 : index
    %44 = vector.load %arg9[%c0_19, %c0_20] : memref<8x128xf32, #tpu.memory_space<vmem>>, vector<8x128xf32>
    tpu.vector_store %arg9[%c0_19, %c0_20], %43 {strides = array<i32>} : memref<8x128xf32, #tpu.memory_space<vmem>>, vector<8x128xf32>,
    return
  }
  func.func @transform_0(%arg0: i32) -> i32 {
    %c0_i32 = arith.constant 0 : i32
    %c0_i32_0 = arith.constant 0 : i32
    return %c0_i32 : i32
  }
  func.func @transform_1(%arg0: i32) -> (i32, i32) {
    %c0_i32 = arith.constant 0 : i32
    %c0_i32_0 = arith.constant 0 : i32
    %c0_i32_1 = arith.constant 0 : i32
    return %c0_i32, %c0_i32_0 : i32, i32
  }
  func.func @transform_2(%arg0: i32) -> (i32, i32) {
    %c0_i32 = arith.constant 0 : i32
    %c0_i32_0 = arith.constant 0 : i32
    %c0_i32_1 = arith.constant 0 : i32
    return %c0_i32, %c0_i32_0 : i32, i32
  }
  func.func @transform_3(%arg0: i32) -> (i32, i32) {
    %c0_i32 = arith.constant 0 : i32
    %c0_i32_0 = arith.constant 0 : i32
    return %arg0, %c0_i32 : i32, i32
  }
  func.func @transform_4(%arg0: i32) -> (i32, i32) {
    %c0_i32 = arith.constant 0 : i32
    %c0_i32_0 = arith.constant 0 : i32
    return %arg0, %c0_i32 : i32, i32
  }
  func.func @transform_5(%arg0: i32) -> (i32, i32) {
    %c0_i32 = arith.constant 0 : i32
    %c0_i32_0 = arith.constant 0 : i32
    return %arg0, %c0_i32 : i32, i32
  }
  func.func @transform_6(%arg0: i32) -> (i32, i32) {
    %c1_i32 = arith.constant 1 : i32
    %0 = arith.addi %arg0, %c1_i32 : i32
    %c1_i32_0 = arith.constant 1 : i32
    %1 = arith.muli %0, %c1_i32_0 : i32
    %c0_i32 = arith.constant 0 : i32
    %c0_i32_1 = arith.constant 0 : i32
    return %1, %c0_i32 : i32, i32
  }
  func.func @transform_7(%arg0: i32) -> (i32, i32) {
    %c0_i32 = arith.constant 0 : i32
    %c0_i32_0 = arith.constant 0 : i32
    return %arg0, %c0_i32 : i32, i32
  }
  func.func @transform_8(%arg0: i32) -> (i32, i32) {
    %c0_i32 = arith.constant 0 : i32
    %c0_i32_0 = arith.constant 0 : i32
    return %arg0, %c0_i32 : i32, i32
  }
}

</mosaic_0001>

<llo_original>
// kernel: force_model_forward.1
$region0: #{force_model_forward.1}
  #allocation0 [shape = 'u32[]', space=smem, size = 0x4, offset = 0x4, fixed_abs, tag = 'smem constant byte address 0x4 - core index']
  #allocation1 [shape = 'u32[144,128]{1,0:T(1,128)}', space=vmem, size = 0x12000, scoped, tag = 'internal scratch']
  %s0 = inlined_call_operand.vmem [shape: f32[5], index: 0, kind: input, shape index: {}]
  %s1 = inlined_call_operand.vmem [shape: f32[128,128], index: 1, kind: input, shape index: {}]
  %s2 = inlined_call_operand.vmem [shape: f32[128,128], index: 2, kind: input, shape index: {}]
  %s3 = inlined_call_operand.vmem [shape: f32[8,128], index: 3, kind: input, shape index: {}]
  %s4 = inlined_call_operand.vmem [shape: f32[8,128], index: 4, kind: input, shape index: {}]
  %s5 = inlined_call_operand.vmem [shape: f32[16,128], index: 5, kind: input, shape index: {}, may-alias: {5,6}]
  %s6 = inlined_call_operand.vmem [shape: f32[16,128], index: 6, kind: input, shape index: {}, may-alias: {5,6}]
  %s7 = inlined_call_operand.vmem [shape: f32[8,128], index: 7, kind: output, shape index: {0}]
  %s8 = inlined_call_operand.vmem [shape: f32[8,128], index: 8, kind: output, shape index: {1}]
  %9 = xla_tuple %s7, %s8
  %s10 = sld [smem:[#allocation0]]
  $region50: #{force_model_forward.1} parent=0
    _
  %s12 = ssub.s32 1, %s10
  %s13 = scalar_select 0, %s12, %s10
  $region1: #{force_model_forward.1} parent=0
    #allocation2 [shape = 'u8[512]{0}', space=smem, size = 0x200, scoped, tag = 'input window, operand 0, single buffered']
    #allocation3 [shape = 's32[1]{0}', space=sflag, size = 0x4, scoped, tag = 'scoped memory for force_model_forward.1']
    %14 = vsyncpa [#allocation3], 0
    // Predicated region
    $region2: #{force_model_forward.1} parent=1 // pred_check
      _
    $region3: #{force_model_forward.1} parent=1 // pred_check_branch
      %16 = sbr.rel (0) target = $region5
    $region4: #{force_model_forward.1} parent=1 // pred_region
      %s18 = ssub.s32 16, 16
      %19 = vsyncadd [#allocation3], %s18
      %s21 = sshll.u32 %s0, 4
      %s22 = int_to_ptr.vmem [resolvable:$true] %s21
      %24 = dma.vmem_to_smem %s22, 16, [#allocation2], [#allocation3]
    $region5: #{force_model_forward.1} parent=1 // pred_fallthru
      _
    // Predicated region
    $region6: #{force_model_forward.1} parent=1 // pred_check
      _
    $region7: #{force_model_forward.1} parent=1 // pred_check_branch
      %26 = sbr.rel (0) target = $region9
    $region8: #{force_model_forward.1} parent=1 // pred_region
      _
    $region9: #{force_model_forward.1} parent=1 // pred_fallthru
      _
    // Predicated region
    $region10: #{force_model_forward.1} parent=1 // pred_check
      _
    $region11: #{force_model_forward.1} parent=1 // pred_check_branch
      %28 = sbr.rel (0) target = $region13
    $region12: #{force_model_forward.1} parent=1 // pred_region
      _
    $region13: #{force_model_forward.1} parent=1 // pred_fallthru
      _
    // Predicated region
    $region14: #{force_model_forward.1} parent=1 // pred_check
      _
    $region15: #{force_model_forward.1} parent=1 // pred_check_branch
      %30 = sbr.rel (0) target = $region17
    $region16: #{force_model_forward.1} parent=1 // pred_region
      _
    $region17: #{force_model_forward.1} parent=1 // pred_fallthru
      _
    // Predicated region
    $region18: #{force_model_forward.1} parent=1 // pred_check
      _
    $region19: #{force_model_forward.1} parent=1 // pred_check_branch
      %32 = sbr.rel (0) target = $region21
    $region20: #{force_model_forward.1} parent=1 // pred_region
      _
    $region21: #{force_model_forward.1} parent=1 // pred_fallthru
      _
    // Predicated region
    $region22: #{force_model_forward.1} parent=1 // pred_check
      _
    $region23: #{force_model_forward.1} parent=1 // pred_check_branch
      %34 = sbr.rel (0) target = $region25
    $region24: #{force_model_forward.1} parent=1 // pred_region
      _
    $region25: #{force_model_forward.1} parent=1 // pred_fallthru
      _
    // Predicated region
    $region26: #{force_model_forward.1} parent=1 // pred_check
      _
    $region27: #{force_model_forward.1} parent=1 // pred_check_branch
      %36 = sbr.rel (0) target = $region29
    $region28: #{force_model_forward.1} parent=1 // pred_region
      %s37 = sadd.s32 0, 1
      %p38 = scmp.lt.s32.totalorder %s37, 1
      %s39 = scalar_select %p38, %s37, 1
      %s40 = smul.addr %s39, 8
      %s41 = scalar_lea.vmem %s6, %s40
      %s42 = sadd.s32 0, 1
    $region29: #{force_model_forward.1} parent=1 // pred_fallthru
      _
    // Predicated region
    $region30: #{force_model_forward.1} parent=1 // pred_check
      _
    $region31: #{force_model_forward.1} parent=1 // pred_check_branch
      %44 = sbr.rel (0) target = $region33
    $region32: #{force_model_forward.1} parent=1 // pred_region
      %45 = dma.done [#allocation3], 16
    $region33: #{force_model_forward.1} parent=1 // pred_fallthru
      _
    %46 = sfence
    %s47 = sadd.s32 0, 1
    %p48 = scmp.lt.s32.totalorder %s47, 1
    %s49 = scalar_select %p48, %s47, 1
    %s50 = smul.addr %s49, 8
    %s51 = scalar_lea.vmem %s6, %s50
    %s52 = sadd.s32 0, 1
    %p53 = scmp.lt.s32.totalorder %s52, 1
    %s54 = scalar_select %p53, %s52, 1
    %s55 = smul.addr %s54, 8
    %s56 = scalar_lea.vmem %s6, %s55
    %s57 = sadd.s32 0, 1
    %s58 = sld [smem:[#allocation2]]
    %s59 = sld [smem:[#allocation2 + $0x1]]
    %s60 = sld [smem:[#allocation2 + $0x2]]
    %s61 = sld [smem:[#allocation2 + $0x3]]
    %s62 = sld [smem:[#allocation2 + $0x4]]
    %v63 = vld [vmem:[%s3] sm:$0xff]
    %v64 = vstv %s59
    %v65 = vmul.f32 %v64, %v63
    %v66 = vstv %s60
    %v67 = vadd.f32 %v65, %v66
    %v68 = vand.u32 2147483647, %v67
    %vm69 = vcmp.le.f32.partialorder %v68, 0.7853982
    %vm70 = vcmp.lt.s32.totalorder %v67, 0
    %v71 = vand.u32 %v67, 2139095040
    %v72 = vshrl.u32 %v71, 23
    %v73 = vsub.s32 %v72, 127
    %v74 = vand.u32 2147483647, %v67
    %v75 = vand.u32 %v74, 8388607
    %v76 = vor.u32 %v75, 8388608
    %v77 = vsub.s32 0, %v76
    %v78 = vadd.s32 %v73, 1
    %vm79 = vcmp.gt.s32.totalorder %v78, 0
    %v80 = vsel %vm79, %v78, 0
    %v81 = vshrl.u32 %v80, 5
    %v82 = vand.u32 %v80, 31
    %v83 = vsub.s32 32, %v82
    %v84 = vshrl.u32 683565275, %v83
    %v85 = vshll.u32 683565275, %v82
    %v86 = vshrl.u32 2475754826, %v83
    %v87 = vor.u32 %v85, %v86
    %v88 = vshll.u32 2475754826, %v82
    %v89 = vshrl.u32 2131351028, %v83
    %v90 = vor.u32 %v88, %v89
    %v91 = vshll.u32 2131351028, %v82
    %v92 = vshrl.u32 2102212464, %v83
    %v93 = vor.u32 %v91, %v92
    %v94 = vshll.u32 2102212464, %v82
    %v95 = vshrl.u32 920167782, %v83
    %v96 = vor.u32 %v94, %v95
    %v97 = vshll.u32 920167782, %v82
    %v98 = vshrl.u32 1326507024, %v83
    %v99 = vor.u32 %v97, %v98
    %vm100 = vcmp.lt.s32.totalorder %v81, 1
    %vm101 = vcmp.lt.s32.totalorder %v81, 2
    %vm102 = vcmp.lt.s32.totalorder %v81, 3
    %vm103 = vcmp.lt.s32.totalorder %v81, 4
    %v104 = vsel %vm100, %v84, %v87
    %v105 = vsel %vm103, %v93, 2102212464
    %v106 = vsel %vm102, %v90, %v105
    %v107 = vsel %vm101, %v104, %v106
    %v108 = vsel %vm100, %v87, %v90
    %v109 = vsel %vm103, %v96, 920167782
    %v110 = vsel %vm102, %v93, %v109
    %v111 = vsel %vm101, %v108, %v110
    %v112 = vsel %vm100, %v90, %v93
    %v113 = vsel %vm103, %v99, 1326507024
    %v114 = vsel %vm102, %v96, %v113
    %v115 = vsel %vm101, %v112, %v114
    %v116 = vshll.u32 %v76, 8
    %v117 = vmul.u32.u64.compose %v116, %v115
    %v118 = vextract.low.u32 %v117
    %v119 = vextract.high.u32 %v117
    %v120 = vmul.u32.u64.compose %v116, %v111
    %v121 = vextract.low.u32 %v120
    %v122 = vextract.high.u32 %v120
    %v123 = vmul.u32 %v116, %v107
    %v124 = vadd.s32 %v119, %v121
    %vm125 = vc.u32 %v119, %v121
    %v126 = vadd.s32 %v122, 1
    %v127 = vsel %vm125, %v126, %v122
    %v128 = vadd.s32 %v123, %v127
    %v129 = vadd.s32 %v128, 536870912
    %v130 = vshrl.u32 %v129, 30
    %v131 = vshll.u32 %v130, 30
    %v132 = vsub.s32 %v128, %v131
    %vm133 = vcmp.lt.s32.totalorder %v132, 0
    %v134 = vsub.s32 0, %v132
    %v135 = vsel %vm133, %v134, %v132
    %v136 = vclz %v135
    %v137 = vsub.s32 %v136, 2
    %vm138 = vcmp.gt.s32.totalorder 0, %v137
    %v139 = vsel %vm138, 0, %v137
    %v140 = vsub.s32 32, %v139
    %v141 = vshll.u32 %v132, %v139
    %v142 = vshrl.u32 %v124, %v140
    %v143 = vor.u32 %v141, %v142
    %v144 = vsub.s32 4294967266, %v139
    %v145 = vadd.s32 %v144, 127
    %v146 = vshll.u32 %v145, 23
    %v147 = vor.u32 4788187, %v146
    %v148 = vand.u32 2147483647, %v147
    %v150 = vcvt.s32.f32 %v143
    %v151 = vmul.f32 %v150, %v148
    %v152 = vxor.u32 %v151, 2147483648
    %v153 = vsel %vm70, %v152, %v151
    %v154 = vsub.s32 4, %v130
    %v155 = vsel %vm70, %v154, %v130
    %v156 = vsel %vm69, %v67, %v153
    %v157 = vsel %vm69, 0, %v155
    %v158 = vcosq.f32.pop %v156
    %v159 = vsinq.f32.pop %v156
    %vm160 = vweird.f32 %v67
    %v161 = vand.u32 %v157, 3
    %vm162 = vcmp.lt.s32.totalorder %v161, 2
    %vm163 = vcmp.eq.s32.totalorder %v161, 0
    %v164 = vxor.u32 %v159, 2147483648
    %v165 = vsel %vm163, %v158, %v164
    %vm166 = vcmp.eq.s32.totalorder %v161, 2
    %v167 = vxor.u32 %v158, 2147483648
    %v168 = vsel %vm166, %v167, %v159
    %v169 = vsel %vm162, %v165, %v168
    %v170 = vsel %vm160, nan, %v169
    %v171 = vsub.f32 1.0, %v170
    %v172 = vstv %s62
    %v173 = vmul.f32 %v172, %v171
    %v174 = vtanh.pop %v173
    %s175 = ssub.f32 0.0, %s61
    %v176 = vmul.f32 %v174, %v174
    %v177 = vsub.f32 1.0, %v176
    %v178 = vstv %s175
    %v179 = vmul.f32 %v178, %v177
    %s180 = smul.f32 %s62, %s59
    %v181 = vstv %s180
    %v182 = vmul.f32 %v179, %v181
    %v183 = vand.u32 2147483647, %v67
    %vm184 = vcmp.le.f32.partialorder %v183, 0.7853982
    %vm185 = vcmp.lt.s32.totalorder %v67, 0
    %v186 = vand.u32 %v67, 2139095040
    %v187 = vshrl.u32 %v186, 23
    %v188 = vsub.s32 %v187, 127
    %v189 = vand.u32 2147483647, %v67
    %v190 = vand.u32 %v189, 8388607
    %v191 = vor.u32 %v190, 8388608
    %v192 = vsub.s32 0, %v191
    %v193 = vadd.s32 %v188, 1
    %vm194 = vcmp.gt.s32.totalorder %v193, 0
    %v195 = vsel %vm194, %v193, 0
    %v196 = vshrl.u32 %v195, 5
    %v197 = vand.u32 %v195, 31
    %v198 = vsub.s32 32, %v197
    %v199 = vshrl.u32 683565275, %v198
    %v200 = vshll.u32 683565275, %v197
    %v201 = vshrl.u32 2475754826, %v198
    %v202 = vor.u32 %v200, %v201
    %v203 = vshll.u32 2475754826, %v197
    %v204 = vshrl.u32 2131351028, %v198
    %v205 = vor.u32 %v203, %v204
    %v206 = vshll.u32 2131351028, %v197
    %v207 = vshrl.u32 2102212464, %v198
    %v208 = vor.u32 %v206, %v207
    %v209 = vshll.u32 2102212464, %v197
    %v210 = vshrl.u32 920167782, %v198
    %v211 = vor.u32 %v209, %v210
    %v212 = vshll.u32 920167782, %v197
    %v213 = vshrl.u32 1326507024, %v198
    %v214 = vor.u32 %v212, %v213
    %vm215 = vcmp.lt.s32.totalorder %v196, 1
    %vm216 = vcmp.lt.s32.totalorder %v196, 2
    %vm217 = vcmp.lt.s32.totalorder %v196, 3
    %vm218 = vcmp.lt.s32.totalorder %v196, 4
    %v219 = vsel %vm215, %v199, %v202
    %v220 = vsel %vm218, %v208, 2102212464
    %v221 = vsel %vm217, %v205, %v220
    %v222 = vsel %vm216, %v219, %v221
    %v223 = vsel %vm215, %v202, %v205
    %v224 = vsel %vm218, %v211, 920167782
    %v225 = vsel %vm217, %v208, %v224
    %v226 = vsel %vm216, %v223, %v225
    %v227 = vsel %vm215, %v205, %v208
    %v228 = vsel %vm218, %v214, 1326507024
    %v229 = vsel %vm217, %v211, %v228
    %v230 = vsel %vm216, %v227, %v229
    %v231 = vshll.u32 %v191, 8
    %v232 = vmul.u32.u64.compose %v231, %v230
    %v233 = vextract.low.u32 %v232
    %v234 = vextract.high.u32 %v232
    %v235 = vmul.u32.u64.compose %v231, %v226
    %v236 = vextract.low.u32 %v235
    %v237 = vextract.high.u32 %v235
    %v238 = vmul.u32 %v231, %v222
    %v239 = vadd.s32 %v234, %v236
    %vm240 = vc.u32 %v234, %v236
    %v241 = vadd.s32 %v237, 1
    %v242 = vsel %vm240, %v241, %v237
    %v243 = vadd.s32 %v238, %v242
    %v244 = vadd.s32 %v243, 536870912
    %v245 = vshrl.u32 %v244, 30
    %v246 = vshll.u32 %v245, 30
    %v247 = vsub.s32 %v243, %v246
    %vm248 = vcmp.lt.s32.totalorder %v247, 0
    %v249 = vsub.s32 0, %v247
    %v250 = vsel %vm248, %v249, %v247
    %v251 = vclz %v250
    %v252 = vsub.s32 %v251, 2
    %vm253 = vcmp.gt.s32.totalorder 0, %v252
    %v254 = vsel %vm253, 0, %v252
    %v255 = vsub.s32 32, %v254
    %v256 = vshll.u32 %v247, %v254
    %v257 = vshrl.u32 %v239, %v255
    %v258 = vor.u32 %v256, %v257
    %v259 = vsub.s32 4294967266, %v254
    %v260 = vadd.s32 %v259, 127
    %v261 = vshll.u32 %v260, 23
    %v262 = vor.u32 4788187, %v261
    %v263 = vand.u32 2147483647, %v262
    %v265 = vcvt.s32.f32 %v258
    %v266 = vmul.f32 %v265, %v263
    %v267 = vxor.u32 %v266, 2147483648
    %v268 = vsel %vm185, %v267, %v266
    %v269 = vsub.s32 4, %v245
    %v270 = vsel %vm185, %v269, %v245
    %v271 = vsel %vm184, %v67, %v268
    %v272 = vsel %vm184, 0, %v270
    %v273 = vcosq.f32.pop %v271
    %v274 = vsinq.f32.pop %v271
    %vm275 = vweird.f32 %v67
    %v276 = vadd.s32 %v272, 3
    %v277 = vand.u32 %v276, 3
    %vm278 = vcmp.lt.s32.totalorder %v277, 2
    %vm279 = vcmp.eq.s32.totalorder %v277, 0
    %v280 = vxor.u32 %v274, 2147483648
    %v281 = vsel %vm279, %v273, %v280
    %vm282 = vcmp.eq.s32.totalorder %v277, 2
    %v283 = vxor.u32 %v273, 2147483648
    %v284 = vsel %vm282, %v283, %v274
    %v285 = vsel %vm278, %v281, %v284
    %v286 = vsel %vm275, nan, %v285
    %v287 = vmul.f32 %v182, %v286
    %v288 = vmul.f32 %v63, 0.0
    %v289 = vadd.f32 %v287, %v288
    %v290 = vld [vmem:[%s4] sm:$0xff]
    %v291 = vstv %s58
    %v292 = vmul.f32 %v291, %v290
    %v293 = vadd.f32 %v289, %v292
    %294 = vst [vmem:[%s7] sm:$0xff] %v293
    %v295 = vld [vmem:[%s5] sm:$0xff]
    %v296 = vld [vmem:[%s56] sm:$0xff]
    %v297 = vld [vmem:[%s1] sm:$0xff]
    %v298 = vld [vmem:[%s1 + $0x8] sm:$0xff]
    %v299 = vld [vmem:[%s1 + $0x10] sm:$0xff]
    %v300 = vld [vmem:[%s1 + $0x18] sm:$0xff]
    %v301 = vld [vmem:[%s1 + $0x20] sm:$0xff]
    %v302 = vld [vmem:[%s1 + $0x28] sm:$0xff]
    %v303 = vld [vmem:[%s1 + $0x30] sm:$0xff]
    %v304 = vld [vmem:[%s1 + $0x38] sm:$0xff]
    %v305 = vld [vmem:[%s1 + $0x40] sm:$0xff]
    %v306 = vld [vmem:[%s1 + $0x48] sm:$0xff]
    %v307 = vld [vmem:[%s1 + $0x50] sm:$0xff]
    %v308 = vld [vmem:[%s1 + $0x58] sm:$0xff]
    %v309 = vld [vmem:[%s1 + $0x60] sm:$0xff]
    %v310 = vld [vmem:[%s1 + $0x68] sm:$0xff]
    %v311 = vld [vmem:[%s1 + $0x70] sm:$0xff]
    %v312 = vld [vmem:[%s1 + $0x78] sm:$0xff]
    %v313 = vld [vmem:[%s2] sm:$0xff]
    %v314 = vld [vmem:[%s2 + $0x8] sm:$0xff]
    %v315 = vld [vmem:[%s2 + $0x10] sm:$0xff]
    %v316 = vld [vmem:[%s2 + $0x18] sm:$0xff]
    %v317 = vld [vmem:[%s2 + $0x20] sm:$0xff]
    %v318 = vld [vmem:[%s2 + $0x28] sm:$0xff]
    %v319 = vld [vmem:[%s2 + $0x30] sm:$0xff]
    %v320 = vld [vmem:[%s2 + $0x38] sm:$0xff]
    %v321 = vld [vmem:[%s2 + $0x40] sm:$0xff]
    %v322 = vld [vmem:[%s2 + $0x48] sm:$0xff]
    %v323 = vld [vmem:[%s2 + $0x50] sm:$0xff]
    %v324 = vld [vmem:[%s2 + $0x58] sm:$0xff]
    %v325 = vld [vmem:[%s2 + $0x60] sm:$0xff]
    %v326 = vld [vmem:[%s2 + $0x68] sm:$0xff]
    %v327 = vld [vmem:[%s2 + $0x70] sm:$0xff]
    %v328 = vld [vmem:[%s2 + $0x78] sm:$0xff]
    %vm331 = vcmask 1046528
    %v332 = vrot.slane %v295, 1
    %v333 = vrot.slane %v296, 1
    %v334 = vsel %vm331, %v332, %v333
    %336 = vmatprep.subr.mxu0 0.0
    %337 = vmatpush1.msra.mxu0 %v328
    %338 = vmatprep.subr.mxu0 0.0
    %339 = vmatpush1.msra.mxu0 %v327
    %340 = vmatprep.subr.mxu0 0.0
    %341 = vmatpush1.msra.mxu0 %v326
    %342 = vmatprep.subr.mxu0 0.0
    %343 = vmatpush1.msra.mxu0 %v325
    %344 = vmatprep.subr.mxu0 0.0
    %345 = vmatpush1.msra.mxu0 %v324
    %346 = vmatprep.subr.mxu0 0.0
    %347 = vmatpush1.msra.mxu0 %v323
    %348 = vmatprep.subr.mxu0 0.0
    %349 = vmatpush1.msra.mxu0 %v322
    %350 = vmatprep.subr.mxu0 0.0
    %351 = vmatpush1.msra.mxu0 %v321
    %352 = vmatprep.subr.mxu0 0.0
    %353 = vmatpush1.msra.mxu0 %v320
    %354 = vmatprep.subr.mxu0 0.0
    %355 = vmatpush1.msra.mxu0 %v319
    %356 = vmatprep.subr.mxu0 0.0
    %357 = vmatpush1.msra.mxu0 %v318
    %358 = vmatprep.subr.mxu0 0.0
    %359 = vmatpush1.msra.mxu0 %v317
    %360 = vmatprep.subr.mxu0 0.0
    %361 = vmatpush1.msra.mxu0 %v316
    %362 = vmatprep.subr.mxu0 0.0
    %363 = vmatpush1.msra.mxu0 %v315
    %364 = vmatprep.subr.mxu0 0.0
    %365 = vmatpush1.msra.mxu0 %v314
    %366 = vmatprep.subr.mxu0 0.0
    %367 = vmatpush1.msra.mxu0 %v313
    %368 = vmatprep.subr.mxu0 0.0
    %369 = vmatpush2.msra.mxu0 0.0
    %370 = vmatprep.subr.mxu0 0.0
    %371 = vmatpush2.msra.mxu0 0.0
    %372 = vmatprep.subr.mxu0 0.0
    %373 = vmatpush2.msra.mxu0 0.0
    %374 = vmatprep.subr.mxu0 0.0
    %375 = vmatpush2.msra.mxu0 0.0
    %376 = vmatprep.subr.mxu0 0.0
    %377 = vmatpush2.msra.mxu0 0.0
    %378 = vmatprep.subr.mxu0 0.0
    %379 = vmatpush2.msra.mxu0 0.0
    %380 = vmatprep.subr.mxu0 0.0
    %381 = vmatpush2.msra.mxu0 0.0
    %382 = vmatprep.subr.mxu0 0.0
    %383 = vmatpush2.msra.mxu0 0.0
    %384 = vmatprep.subr.mxu0 0.0
    %385 = vmatpush2.msra.mxu0 0.0
    %386 = vmatprep.subr.mxu0 0.0
    %387 = vmatpush2.msra.mxu0 0.0
    %388 = vmatprep.subr.mxu0 0.0
    %389 = vmatpush2.msra.mxu0 0.0
    %390 = vmatprep.subr.mxu0 0.0
    %391 = vmatpush2.msra.mxu0 0.0
    %392 = vmatprep.subr.mxu0 0.0
    %393 = vmatpush2.msra.mxu0 0.0
    %394 = vmatprep.subr.mxu0 0.0
    %395 = vmatpush2.msra.mxu0 0.0
    %396 = vmatprep.subr.mxu0 0.0
    %397 = vmatpush2.msra.mxu0 0.0
    %398 = vmatprep.subr.mxu0 0.0
    %399 = vmatpush2.msra.mxu0 0.0
    %400 = vmatprep.mubr.f32.mxu0 0.0
    %401 = vmatmul.mubr.f32.gmra.mxu0 %v334
    %v402 = vpop.f32.mrf.mxu0
    %v403 = vadd.f32 0.0, %v402
    %v404 = vpop.f32.mrf.mxu0
    %405 = vdwg.mxu0
    %406 = vmatprep.subr.mxu0 0.0
    %407 = vmatpush1.msra.mxu0 %v312
    %408 = vmatprep.subr.mxu0 0.0
    %409 = vmatpush1.msra.mxu0 %v311
    %410 = vmatprep.subr.mxu0 0.0
    %411 = vmatpush1.msra.mxu0 %v310
    %412 = vmatprep.subr.mxu0 0.0
    %413 = vmatpush1.msra.mxu0 %v309
    %414 = vmatprep.subr.mxu0 0.0
    %415 = vmatpush1.msra.mxu0 %v308
    %416 = vmatprep.subr.mxu0 0.0
    %417 = vmatpush1.msra.mxu0 %v307
    %418 = vmatprep.subr.mxu0 0.0
    %419 = vmatpush1.msra.mxu0 %v306
    %420 = vmatprep.subr.mxu0 0.0
    %421 = vmatpush1.msra.mxu0 %v305
    %422 = vmatprep.subr.mxu0 0.0
    %423 = vmatpush1.msra.mxu0 %v304
    %424 = vmatprep.subr.mxu0 0.0
    %425 = vmatpush1.msra.mxu0 %v303
    %426 = vmatprep.subr.mxu0 0.0
    %427 = vmatpush1.msra.mxu0 %v302
    %428 = vmatprep.subr.mxu0 0.0
    %429 = vmatpush1.msra.mxu0 %v301
    %430 = vmatprep.subr.mxu0 0.0
    %431 = vmatpush1.msra.mxu0 %v300
    %432 = vmatprep.subr.mxu0 0.0
    %433 = vmatpush1.msra.mxu0 %v299
    %434 = vmatprep.subr.mxu0 0.0
    %435 = vmatpush1.msra.mxu0 %v298
    %436 = vmatprep.subr.mxu0 0.0
    %437 = vmatpush1.msra.mxu0 %v297
    %438 = vmatprep.subr.mxu0 0.0
    %439 = vmatpush2.msra.mxu0 0.0
    %440 = vmatprep.subr.mxu0 0.0
    %441 = vmatpush2.msra.mxu0 0.0
    %442 = vmatprep.subr.mxu0 0.0
    %443 = vmatpush2.msra.mxu0 0.0
    %444 = vmatprep.subr.mxu0 0.0
    %445 = vmatpush2.msra.mxu0 0.0
    %446 = vmatprep.subr.mxu0 0.0
    %447 = vmatpush2.msra.mxu0 0.0
    %448 = vmatprep.subr.mxu0 0.0
    %449 = vmatpush2.msra.mxu0 0.0
    %450 = vmatprep.subr.mxu0 0.0
    %451 = vmatpush2.msra.mxu0 0.0
    %452 = vmatprep.subr.mxu0 0.0
    %453 = vmatpush2.msra.mxu0 0.0
    %454 = vmatprep.subr.mxu0 0.0
    %455 = vmatpush2.msra.mxu0 0.0
    %456 = vmatprep.subr.mxu0 0.0
    %457 = vmatpush2.msra.mxu0 0.0
    %458 = vmatprep.subr.mxu0 0.0
    %459 = vmatpush2.msra.mxu0 0.0
    %460 = vmatprep.subr.mxu0 0.0
    %461 = vmatpush2.msra.mxu0 0.0
    %462 = vmatprep.subr.mxu0 0.0
    %463 = vmatpush2.msra.mxu0 0.0
    %464 = vmatprep.subr.mxu0 0.0
    %465 = vmatpush2.msra.mxu0 0.0
    %466 = vmatprep.subr.mxu0 0.0
    %467 = vmatpush2.msra.mxu0 0.0
    %468 = vmatprep.subr.mxu0 0.0
    %469 = vmatpush2.msra.mxu0 0.0
    %470 = vmatprep.mubr.f32.mxu0 0.0
    %471 = vmatmul.mubr.f32.gmra.mxu0 %v295
    %v472 = vpop.f32.mrf.mxu0
    %v473 = vadd.f32 %v403, %v472
    %v474 = vpop.f32.mrf.mxu0
    %475 = vdwg.mxu0
    %476 = vst [vmem:[%s8] sm:$0xff] %v473
    // Predicated region
    $region34: #{force_model_forward.1} parent=1 // pred_check
      _
    $region35: #{force_model_forward.1} parent=1 // pred_check_branch
      %478 = sbr.rel (0) target = $region37
    $region36: #{force_model_forward.1} parent=1 // pred_region
      _
    $region37: #{force_model_forward.1} parent=1 // pred_fallthru
      _
    // Predicated region
    $region38: #{force_model_forward.1} parent=1 // pred_check
      _
    $region39: #{force_model_forward.1} parent=1 // pred_check_branch
      %480 = sbr.rel (0) target = $region41
    $region40: #{force_model_forward.1} parent=1 // pred_region
      _
    $region41: #{force_model_forward.1} parent=1 // pred_fallthru
      _
    // Predicated region
    $region42: #{force_model_forward.1} parent=1 // pred_check
      _
    $region43: #{force_model_forward.1} parent=1 // pred_check_branch
      %482 = sbr.rel (0) target = $region45
    $region44: #{force_model_forward.1} parent=1 // pred_region
      _
    $region45: #{force_model_forward.1} parent=1 // pred_fallthru
      _
    // Predicated region
    $region46: #{force_model_forward.1} parent=1 // pred_check
      _
    $region47: #{force_model_forward.1} parent=1 // pred_check_branch
      %484 = sbr.rel (0) target = $region49
    $region48: #{force_model_forward.1} parent=1 // pred_region
      _
    $region49: #{force_model_forward.1} parent=1 // pred_fallthru
      _
    %485 = vsyncpa [#allocation3], 1

</llo_original>
